<compile_context>
chip_gen: v7x
topology: tpu7x:2x2x1
jax: 0.10.0
libtpu: 0.0.40
codegen_flags: <defaults>
</compile_context>

<pallas_src>
import jax
import jax.numpy as jnp
from jax.experimental import pallas as pl
from jax.experimental.pallas import tpu as pltpu

MAX_TB_DEFAULT = 2048  # default cap on the batch tile (rows); sweepable.


def _round_up(n, m):
    return ((n + m - 1) // m) * m


def _cdiv(a, b):
    return -(-a // b)


def _autoencoder_kernel(x_ref,
                        w1, b1, w2, b2, w34, b34, w5, b5, w6, b6,
                        out_ref):
    """One batch tile of the autoencoder forward pass (5 matmuls).

    encoder: Linear(D,128) -> ReLU -> Linear(128,64) -> ReLU -> [Linear(64,2)
    decoder: Linear(2,64)] (fused, no ReLU between) -> ReLU -> Linear(64,128)
             -> ReLU -> Linear(128,D)
    Accumulation / bias / ReLU in f32; matmul operands in compute_dtype.
    """
    cd = w1.dtype  # matmul compute dtype (bf16 by default)
    x = x_ref[...].astype(cd)

    h = jnp.dot(x, w1[...], preferred_element_type=jnp.float32) + b1[...]
    h = jnp.maximum(h, 0.0)
    h = jnp.dot(h.astype(cd), w2[...], preferred_element_type=jnp.float32) + b2[...]
    h = jnp.maximum(h, 0.0)
    # fused bottleneck: Linear(64,2) then Linear(2,64), ReLU applied after.
    h = jnp.dot(h.astype(cd), w34[...], preferred_element_type=jnp.float32) + b34[...]
    h = jnp.maximum(h, 0.0)
    h = jnp.dot(h.astype(cd), w5[...], preferred_element_type=jnp.float32) + b5[...]
    h = jnp.maximum(h, 0.0)
    y = jnp.dot(h.astype(cd), w6[...], preferred_element_type=jnp.float32) + b6[...]

    out_ref[...] = y.astype(out_ref.dtype)


def _choose_tb(B, max_tb):
    """Batch tile: multiple of 8, >=2 grid steps when B>8 (v7x megacore),
    and (nearly) dividing B so the zero-padded tail is minimal."""
    B8 = _round_up(B, 8)
    tb = min(max_tb, max(8, _round_up(_cdiv(B8, 2), 8)))
    n_steps = _cdiv(B8, tb)
    return _round_up(_cdiv(B8, n_steps), 8)


def autoencoder_forward(x, params, *, tb=None, compute_dtype=jnp.bfloat16,
                        vmem_limit_bytes=None):
    """Batch-tiled Pallas forward pass. x: [B, D] -> [B, D] float32."""
    B, D = x.shape
    (w1, b1), (w2, b2), (w3, b3), (w4, b4), (w5, b5), (w6, b6) = params

    # Fuse the bottleneck pair (no ReLU between them) in f32 in the wrapper.
    w34 = w3 @ w4                 # [64, 2] @ [2, 64] -> [64, 64]
    b34 = b3 @ w4 + b4            # [1, 64]

    weights = [w1, w2, w34, w5, w6]
    biases = [b1, b2, b34, b5, b6]
    kparams = []
    for w, b in zip(weights, biases):
        kparams.append(w.astype(compute_dtype))     # matmul operands in bf16
        kparams.append(b.astype(jnp.float32))       # bias added in f32

    if tb is None:
        tb = _choose_tb(B, MAX_TB_DEFAULT)
    Bp = _round_up(B, tb)

    xf = x.astype(jnp.float32)
    if Bp != B:
        xf = jnp.pad(xf, ((0, Bp - B), (0, 0)))     # row-only tail pad (small)

    grid = (Bp // tb,)
    x_spec = pl.BlockSpec((tb, D), lambda i: (i, 0))        # un-padded lanes
    out_spec = pl.BlockSpec((tb, D), lambda i: (i, 0))
    # Constant index_map -> single VMEM-resident copy of each weight/bias.
    param_specs = [pl.BlockSpec(p.shape, lambda i: (0, 0)) for p in kparams]

    flops = 2 * Bp * sum(w.shape[0] * w.shape[1] for w in weights)
    bytes_accessed = (Bp * D) * 4 * 2 + sum(
        int(p.size) * p.dtype.itemsize for p in kparams)

    compiler_params = pltpu.CompilerParams(
        dimension_semantics=("parallel",),
        vmem_limit_bytes=vmem_limit_bytes)

    out = pl.pallas_call(
        _autoencoder_kernel,
        out_shape=jax.ShapeDtypeStruct((Bp, D), jnp.float32),
        grid=grid,
        in_specs=[x_spec] + param_specs,
        out_specs=out_spec,
        compiler_params=compiler_params,
        cost_estimate=pl.CostEstimate(
            flops=flops, transcendentals=0, bytes_accessed=bytes_accessed),
    )(xf, *kparams)

    return out if Bp == B else out[:B]


def init_linear(key, fan_in, fan_out):
    """PyTorch-style init: U(-1/sqrt(fan_in), 1/sqrt(fan_in)).
    Weight stored as [fan_in, fan_out] (transposed vs. torch) so kernel does x @ W."""
    kw, kb = jax.random.split(key)
    bound = 1.0 / jnp.sqrt(float(fan_in))
    w = jax.random.uniform(kw, (fan_in, fan_out), jnp.float32, -bound, bound)
    b = jax.random.uniform(kb, (1, fan_out), jnp.float32, -bound, bound)
    return w, b


def make_params(key, input_dim):
    # encoder: D->128->64->2 ; decoder: 2->64->128->D
    dims = [(input_dim, 128), (128, 64), (64, 2),
            (2, 64), (64, 128), (128, input_dim)]
    keys = jax.random.split(key, len(dims))
    return [init_linear(k, fi, fo) for k, (fi, fo) in zip(keys, dims)]


def reference_forward(x, params):
    """Pure-JAX f32 reference of the un-fused 6-layer forward pass."""
    h = x
    relu_after = [True, True, False, True, True, False]
    for (w, b), r in zip(params, relu_after):
        h = h @ w + b
        if r:
            h = jnp.maximum(h, 0.0)
    return h


if __name__ == "__main__":
    key = jax.random.PRNGKey(0)
    k_params, k_x = jax.random.split(key)

    B = 8            # batch
    INPUT_DIM = 32   # autoencoder input / reconstruction dim

    params = make_params(k_params, INPUT_DIM)
    x = jax.random.normal(k_x, (B, INPUT_DIM), jnp.float32)

    # Default compute_dtype=bf16 (MXU-native); f32 accumulation keeps error small.
    out = autoencoder_forward(x, params)
    out = jax.block_until_ready(out)

    ref = reference_forward(x, params)
    assert out.shape == (B, INPUT_DIM)
    # bf16 matmul operands vs. f32 reference -> loose tolerance (expected
    # quantization, not a kernel bug).  The f32 path (compute_dtype=jnp.float32)
    # matches the reference to ~1e-5.
    assert jnp.allclose(out, ref, atol=5e-2, rtol=5e-2)
    out_f32 = jax.block_until_ready(
        autoencoder_forward(x, params, compute_dtype=jnp.float32))
    assert jnp.allclose(out_f32, ref, atol=1e-5, rtol=1e-5)

    print("KERNEL_OK")
</pallas_src>

<mosaic_0001>
module attributes {stable_mosaic.version = 11 : i64} {
  func.func @_autoencoder_kernel(%arg0: i32, %arg1: memref<8x32xf32, #tpu.memory_space<vmem>>, %arg2: memref<32x128xbf16, #tpu.memory_space<vmem>>, %arg3: memref<1x128xf32, #tpu.memory_space<vmem>>, %arg4: memref<128x64xbf16, #tpu.memory_space<vmem>>, %arg5: memref<1x64xf32, #tpu.memory_space<vmem>>, %arg6: memref<64x64xbf16, #tpu.memory_space<vmem>>, %arg7: memref<1x64xf32, #tpu.memory_space<vmem>>, %arg8: memref<64x128xbf16, #tpu.memory_space<vmem>>, %arg9: memref<1x128xf32, #tpu.memory_space<vmem>>, %arg10: memref<128x32xbf16, #tpu.memory_space<vmem>>, %arg11: memref<1x32xf32, #tpu.memory_space<vmem>>, %arg12: memref<8x32xf32, #tpu.memory_space<vmem>>) attributes {dimension_semantics = [#tpu.dimension_semantics<parallel>], iteration_bounds = array<i64: 1>, scalar_prefetch = 0 : i64, scratch_operands = 0 : i64, tpu.core_type = #tpu.core_type<tc>, window_params = [{transform_indices = @transform_0, window_bounds = array<i64: 8, 32>}, {pipeline_mode = #tpu.pipeline_mode<synchronous>, transform_indices = @transform_1, window_bounds = array<i64: 32, 128>}, {pipeline_mode = #tpu.pipeline_mode<synchronous>, transform_indices = @transform_2, window_bounds = array<i64: 1, 128>}, {pipeline_mode = #tpu.pipeline_mode<synchronous>, transform_indices = @transform_3, window_bounds = array<i64: 128, 64>}, {pipeline_mode = #tpu.pipeline_mode<synchronous>, transform_indices = @transform_4, window_bounds = array<i64: 1, 64>}, {pipeline_mode = #tpu.pipeline_mode<synchronous>, transform_indices = @transform_5, window_bounds = array<i64: 64, 64>}, {pipeline_mode = #tpu.pipeline_mode<synchronous>, transform_indices = @transform_6, window_bounds = array<i64: 1, 64>}, {pipeline_mode = #tpu.pipeline_mode<synchronous>, transform_indices = @transform_7, window_bounds = array<i64: 64, 128>}, {pipeline_mode = #tpu.pipeline_mode<synchronous>, transform_indices = @transform_8, window_bounds = array<i64: 1, 128>}, {pipeline_mode = #tpu.pipeline_mode<synchronous>, transform_indices = @transform_9, window_bounds = array<i64: 128, 32>}, {pipeline_mode = #tpu.pipeline_mode<synchronous>, transform_indices = @transform_10, window_bounds = array<i64: 1, 32>}, {transform_indices = @transform_11, window_bounds = array<i64: 8, 32>}]} {
    %c0 = arith.constant 0 : index
    %c0_0 = arith.constant 0 : index
    %0 = vector.load %arg1[%c0, %c0_0] : memref<8x32xf32, #tpu.memory_space<vmem>>, vector<8x32xf32>
    %1 = arith.truncf %0 : vector<8x32xf32> to vector<8x32xbf16>
    %c0_1 = arith.constant 0 : index
    %c0_2 = arith.constant 0 : index
    %2 = vector.load %arg2[%c0_1, %c0_2] : memref<32x128xbf16, #tpu.memory_space<vmem>>, vector<32x128xbf16>
    %cst = arith.constant dense<0.000000e+00> : vector<8x128xf32>
    %3 = tpu.matmul %1, %2, %cst {dimension_numbers = #tpu.dot_dimension_numbers<[1], [0], [0], [1], [0, 0, 1, 1], [], []>} : vector<8x32xbf16>, vector<32x128xbf16>, vector<8x128xf32> -> vector<8x128xf32>
    %c0_3 = arith.constant 0 : index
    %c0_4 = arith.constant 0 : index
    %4 = vector.load %arg3[%c0_3, %c0_4] : memref<1x128xf32, #tpu.memory_space<vmem>>, vector<1x128xf32>
    %5 = vector.broadcast %4 : vector<1x128xf32> to vector<8x128xf32>
    %6 = arith.addf %3, %5 : vector<8x128xf32>
    %cst_5 = arith.constant 0.000000e+00 : f32
    %7 = vector.broadcast %cst_5 : f32 to vector<8x128xf32>
    %8 = arith.maximumf %6, %7 : vector<8x128xf32>
    %9 = arith.truncf %8 : vector<8x128xf32> to vector<8x128xbf16>
    %c0_6 = arith.constant 0 : index
    %c0_7 = arith.constant 0 : index
    %10 = vector.load %arg4[%c0_6, %c0_7] : memref<128x64xbf16, #tpu.memory_space<vmem>>, vector<128x64xbf16>
    %cst_8 = arith.constant dense<0.000000e+00> : vector<8x64xf32>
    %11 = tpu.matmul %9, %10, %cst_8 {dimension_numbers = #tpu.dot_dimension_numbers<[1], [0], [0], [1], [0, 0, 1, 1], [], []>} : vector<8x128xbf16>, vector<128x64xbf16>, vector<8x64xf32> -> vector<8x64xf32>
    %c0_9 = arith.constant 0 : index
    %c0_10 = arith.constant 0 : index
    %12 = vector.load %arg5[%c0_9, %c0_10] : memref<1x64xf32, #tpu.memory_space<vmem>>, vector<1x64xf32>
    %13 = vector.broadcast %12 : vector<1x64xf32> to vector<8x64xf32>
    %14 = arith.addf %11, %13 : vector<8x64xf32>
    %cst_11 = arith.constant 0.000000e+00 : f32
    %15 = vector.broadcast %cst_11 : f32 to vector<8x64xf32>
    %16 = arith.maximumf %14, %15 : vector<8x64xf32>
    %17 = arith.truncf %16 : vector<8x64xf32> to vector<8x64xbf16>
    %c0_12 = arith.constant 0 : index
    %c0_13 = arith.constant 0 : index
    %18 = vector.load %arg6[%c0_12, %c0_13] : memref<64x64xbf16, #tpu.memory_space<vmem>>, vector<64x64xbf16>
    %cst_14 = arith.constant dense<0.000000e+00> : vector<8x64xf32>
    %19 = tpu.matmul %17, %18, %cst_14 {dimension_numbers = #tpu.dot_dimension_numbers<[1], [0], [0], [1], [0, 0, 1, 1], [], []>} : vector<8x64xbf16>, vector<64x64xbf16>, vector<8x64xf32> -> vector<8x64xf32>
    %c0_15 = arith.constant 0 : index
    %c0_16 = arith.constant 0 : index
    %20 = vector.load %arg7[%c0_15, %c0_16] : memref<1x64xf32, #tpu.memory_space<vmem>>, vector<1x64xf32>
    %21 = vector.broadcast %20 : vector<1x64xf32> to vector<8x64xf32>
    %22 = arith.addf %19, %21 : vector<8x64xf32>
    %cst_17 = arith.constant 0.000000e+00 : f32
    %23 = vector.broadcast %cst_17 : f32 to vector<8x64xf32>
    %24 = arith.maximumf %22, %23 : vector<8x64xf32>
    %25 = arith.truncf %24 : vector<8x64xf32> to vector<8x64xbf16>
    %c0_18 = arith.constant 0 : index
    %c0_19 = arith.constant 0 : index
    %26 = vector.load %arg8[%c0_18, %c0_19] : memref<64x128xbf16, #tpu.memory_space<vmem>>, vector<64x128xbf16>
    %cst_20 = arith.constant dense<0.000000e+00> : vector<8x128xf32>
    %27 = tpu.matmul %25, %26, %cst_20 {dimension_numbers = #tpu.dot_dimension_numbers<[1], [0], [0], [1], [0, 0, 1, 1], [], []>} : vector<8x64xbf16>, vector<64x128xbf16>, vector<8x128xf32> -> vector<8x128xf32>
    %c0_21 = arith.constant 0 : index
    %c0_22 = arith.constant 0 : index
    %28 = vector.load %arg9[%c0_21, %c0_22] : memref<1x128xf32, #tpu.memory_space<vmem>>, vector<1x128xf32>
    %29 = vector.broadcast %28 : vector<1x128xf32> to vector<8x128xf32>
    %30 = arith.addf %27, %29 : vector<8x128xf32>
    %cst_23 = arith.constant 0.000000e+00 : f32
    %31 = vector.broadcast %cst_23 : f32 to vector<8x128xf32>
    %32 = arith.maximumf %30, %31 : vector<8x128xf32>
    %33 = arith.truncf %32 : vector<8x128xf32> to vector<8x128xbf16>
    %c0_24 = arith.constant 0 : index
    %c0_25 = arith.constant 0 : index
    %34 = vector.load %arg10[%c0_24, %c0_25] : memref<128x32xbf16, #tpu.memory_space<vmem>>, vector<128x32xbf16>
    %cst_26 = arith.constant dense<0.000000e+00> : vector<8x32xf32>
    %35 = tpu.matmul %33, %34, %cst_26 {dimension_numbers = #tpu.dot_dimension_numbers<[1], [0], [0], [1], [0, 0, 1, 1], [], []>} : vector<8x128xbf16>, vector<128x32xbf16>, vector<8x32xf32> -> vector<8x32xf32>
    %c0_27 = arith.constant 0 : index
    %c0_28 = arith.constant 0 : index
    %36 = vector.load %arg11[%c0_27, %c0_28] : memref<1x32xf32, #tpu.memory_space<vmem>>, vector<1x32xf32>
    %37 = vector.broadcast %36 : vector<1x32xf32> to vector<8x32xf32>
    %38 = arith.addf %35, %37 : vector<8x32xf32>
    %c0_29 = arith.constant 0 : index
    %c0_30 = arith.constant 0 : index
    %39 = vector.load %arg12[%c0_29, %c0_30] : memref<8x32xf32, #tpu.memory_space<vmem>>, vector<8x32xf32>
    tpu.vector_store %arg12[%c0_29, %c0_30], %38 {strides = array<i32>} : memref<8x32xf32, #tpu.memory_space<vmem>>, vector<8x32xf32>,
    return
  }
  func.func @transform_0(%arg0: i32) -> (i32, i32) {
    %c0_i32 = arith.constant 0 : i32
    %c0_i32_0 = arith.constant 0 : i32
    return %arg0, %c0_i32 : i32, i32
  }
  func.func @transform_1(%arg0: i32) -> (i32, i32) {
    %c0_i32 = arith.constant 0 : i32
    %c0_i32_0 = arith.constant 0 : i32
    %c0_i32_1 = arith.constant 0 : i32
    return %c0_i32, %c0_i32_0 : i32, i32
  }
  func.func @transform_2(%arg0: i32) -> (i32, i32) {
    %c0_i32 = arith.constant 0 : i32
    %c0_i32_0 = arith.constant 0 : i32
    %c0_i32_1 = arith.constant 0 : i32
    return %c0_i32, %c0_i32_0 : i32, i32
  }
  func.func @transform_3(%arg0: i32) -> (i32, i32) {
    %c0_i32 = arith.constant 0 : i32
    %c0_i32_0 = arith.constant 0 : i32
    %c0_i32_1 = arith.constant 0 : i32
    return %c0_i32, %c0_i32_0 : i32, i32
  }
  func.func @transform_4(%arg0: i32) -> (i32, i32) {
    %c0_i32 = arith.constant 0 : i32
    %c0_i32_0 = arith.constant 0 : i32
    %c0_i32_1 = arith.constant 0 : i32
    return %c0_i32, %c0_i32_0 : i32, i32
  }
  func.func @transform_5(%arg0: i32) -> (i32, i32) {
    %c0_i32 = arith.constant 0 : i32
    %c0_i32_0 = arith.constant 0 : i32
    %c0_i32_1 = arith.constant 0 : i32
    return %c0_i32, %c0_i32_0 : i32, i32
  }
  func.func @transform_6(%arg0: i32) -> (i32, i32) {
    %c0_i32 = arith.constant 0 : i32
    %c0_i32_0 = arith.constant 0 : i32
    %c0_i32_1 = arith.constant 0 : i32
    return %c0_i32, %c0_i32_0 : i32, i32
  }
  func.func @transform_7(%arg0: i32) -> (i32, i32) {
    %c0_i32 = arith.constant 0 : i32
    %c0_i32_0 = arith.constant 0 : i32
    %c0_i32_1 = arith.constant 0 : i32
    return %c0_i32, %c0_i32_0 : i32, i32
  }
  func.func @transform_8(%arg0: i32) -> (i32, i32) {
    %c0_i32 = arith.constant 0 : i32
    %c0_i32_0 = arith.constant 0 : i32
    %c0_i32_1 = arith.constant 0 : i32
    return %c0_i32, %c0_i32_0 : i32, i32
  }
  func.func @transform_9(%arg0: i32) -> (i32, i32) {
    %c0_i32 = arith.constant 0 : i32
    %c0_i32_0 = arith.constant 0 : i32
    %c0_i32_1 = arith.constant 0 : i32
    return %c0_i32, %c0_i32_0 : i32, i32
  }
  func.func @transform_10(%arg0: i32) -> (i32, i32) {
    %c0_i32 = arith.constant 0 : i32
    %c0_i32_0 = arith.constant 0 : i32
    %c0_i32_1 = arith.constant 0 : i32
    return %c0_i32, %c0_i32_0 : i32, i32
  }
  func.func @transform_11(%arg0: i32) -> (i32, i32) {
    %c0_i32 = arith.constant 0 : i32
    %c0_i32_0 = arith.constant 0 : i32
    return %arg0, %c0_i32 : i32, i32
  }
}

</mosaic_0001>

<llo_original>
// kernel: tpu_custom_call.1
$region0: #{tpu_custom_call.1}
  #allocation0 [shape = 'u32[]', space=smem, size = 0x4, offset = 0x4, fixed_abs, tag = 'smem constant byte address 0x4 - core index']
  #allocation1 [shape = 'u32[144,128]{1,0:T(1,128)}', space=vmem, size = 0x12000, scoped, tag = 'internal scratch']
  %s0 = inlined_call_operand.vmem [shape: f32[8,32], index: 0, kind: input, shape index: {}]
  %s1 = inlined_call_operand.vmem [shape: bf16[32,128], index: 1, kind: input, shape index: {}]
  %s2 = inlined_call_operand.vmem [shape: f32[1,128], index: 2, kind: input, shape index: {}]
  %s3 = inlined_call_operand.vmem [shape: bf16[128,64], index: 3, kind: input, shape index: {}]
  %s4 = inlined_call_operand.vmem [shape: f32[1,64], index: 4, kind: input, shape index: {}]
  %s5 = inlined_call_operand.vmem [shape: bf16[64,64], index: 5, kind: input, shape index: {}]
  %s6 = inlined_call_operand.vmem [shape: f32[1,64], index: 6, kind: input, shape index: {}]
  %s7 = inlined_call_operand.vmem [shape: bf16[64,128], index: 7, kind: input, shape index: {}]
  %s8 = inlined_call_operand.vmem [shape: f32[1,128], index: 8, kind: input, shape index: {}]
  %s9 = inlined_call_operand.vmem [shape: bf16[128,32], index: 9, kind: input, shape index: {}]
  %s10 = inlined_call_operand.vmem [shape: f32[1,32], index: 10, kind: input, shape index: {}]
  %s11 = inlined_call_operand.hbm [shape: f32[8,32], index: 11, kind: output, shape index: {}]
  %s12 = sld [smem:[#allocation0]]
  $region54: #{tpu_custom_call.1} parent=0
    _
  %s14 = ssub.s32 1, %s12
  %s15 = scalar_select 0, %s14, %s12
  $region1: #{tpu_custom_call.1} parent=0
    #allocation2 [shape = 'u8[4096]{0}', space=vmem, size = 0x1000, scoped, tag = 'output window, operand 0, single buffered']
    #allocation3 [shape = 's32[1]{0}', space=sflag, size = 0x4, scoped, tag = 'scoped memory for tpu_custom_call.1']
    %16 = vsyncpa [#allocation3], 0
    // Predicated region
    $region2: #{tpu_custom_call.1} parent=1 // pred_check
      _
    $region3: #{tpu_custom_call.1} parent=1 // pred_check_branch
      %18 = sbr.rel (0) target = $region5
    $region4: #{tpu_custom_call.1} parent=1 // pred_region
      _
    $region5: #{tpu_custom_call.1} parent=1 // pred_fallthru
      _
    // Predicated region
    $region6: #{tpu_custom_call.1} parent=1 // pred_check
      _
    $region7: #{tpu_custom_call.1} parent=1 // pred_check_branch
      %20 = sbr.rel (0) target = $region9
    $region8: #{tpu_custom_call.1} parent=1 // pred_region
      _
    $region9: #{tpu_custom_call.1} parent=1 // pred_fallthru
      _
    // Predicated region
    $region10: #{tpu_custom_call.1} parent=1 // pred_check
      _
    $region11: #{tpu_custom_call.1} parent=1 // pred_check_branch
      %22 = sbr.rel (0) target = $region13
    $region12: #{tpu_custom_call.1} parent=1 // pred_region
      _
    $region13: #{tpu_custom_call.1} parent=1 // pred_fallthru
      _
    // Predicated region
    $region14: #{tpu_custom_call.1} parent=1 // pred_check
      _
    $region15: #{tpu_custom_call.1} parent=1 // pred_check_branch
      %24 = sbr.rel (0) target = $region17
    $region16: #{tpu_custom_call.1} parent=1 // pred_region
      _
    $region17: #{tpu_custom_call.1} parent=1 // pred_fallthru
      _
    // Predicated region
    $region18: #{tpu_custom_call.1} parent=1 // pred_check
      _
    $region19: #{tpu_custom_call.1} parent=1 // pred_check_branch
      %26 = sbr.rel (0) target = $region21
    $region20: #{tpu_custom_call.1} parent=1 // pred_region
      _
    $region21: #{tpu_custom_call.1} parent=1 // pred_fallthru
      _
    // Predicated region
    $region22: #{tpu_custom_call.1} parent=1 // pred_check
      _
    $region23: #{tpu_custom_call.1} parent=1 // pred_check_branch
      %28 = sbr.rel (0) target = $region25
    $region24: #{tpu_custom_call.1} parent=1 // pred_region
      _
    $region25: #{tpu_custom_call.1} parent=1 // pred_fallthru
      _
    // Predicated region
    $region26: #{tpu_custom_call.1} parent=1 // pred_check
      _
    $region27: #{tpu_custom_call.1} parent=1 // pred_check_branch
      %30 = sbr.rel (0) target = $region29
    $region28: #{tpu_custom_call.1} parent=1 // pred_region
      _
    $region29: #{tpu_custom_call.1} parent=1 // pred_fallthru
      _
    // Predicated region
    $region30: #{tpu_custom_call.1} parent=1 // pred_check
      _
    $region31: #{tpu_custom_call.1} parent=1 // pred_check_branch
      %32 = sbr.rel (0) target = $region33
    $region32: #{tpu_custom_call.1} parent=1 // pred_region
      _
    $region33: #{tpu_custom_call.1} parent=1 // pred_fallthru
      _
    // Predicated region
    $region34: #{tpu_custom_call.1} parent=1 // pred_check
      _
    $region35: #{tpu_custom_call.1} parent=1 // pred_check_branch
      %34 = sbr.rel (0) target = $region37
    $region36: #{tpu_custom_call.1} parent=1 // pred_region
      _
    $region37: #{tpu_custom_call.1} parent=1 // pred_fallthru
      _
    // Predicated region
    $region38: #{tpu_custom_call.1} parent=1 // pred_check
      _
    $region39: #{tpu_custom_call.1} parent=1 // pred_check_branch
      %36 = sbr.rel (0) target = $region41
    $region40: #{tpu_custom_call.1} parent=1 // pred_region
      _
    $region41: #{tpu_custom_call.1} parent=1 // pred_fallthru
      _
    // Predicated region
    $region42: #{tpu_custom_call.1} parent=1 // pred_check
      _
    $region43: #{tpu_custom_call.1} parent=1 // pred_check_branch
      %38 = sbr.rel (0) target = $region45
    $region44: #{tpu_custom_call.1} parent=1 // pred_region
      _
    $region45: #{tpu_custom_call.1} parent=1 // pred_fallthru
      _
    %v40 = vld [vmem:[%s0] sm:$0xff]
    %v41 = vpack.c.bf16 %v40, %v40
    %v42 = vld [vmem:[%s1] sm:$0xf]
    %v43 = vld [vmem:[%s1 + $0x4] sm:$0xf]
    %v44 = vld [vmem:[%s1 + $0x8] sm:$0xf]
    %v45 = vld [vmem:[%s1 + $0xc] sm:$0xf]
    %v46 = vld [vmem:[%s2] sm:$0x1]
    %v48 = vlaneseq
    %v49 = vshrl.u32 %v48, 7
    %v50 = vsub.s32 0, %v49
    %v51 = vrot.slane %v46, %v50
    %v57 = vunpack.c.l.b16 %v42
    %v58 = vunpack.c.l.b16 %v43
    %v59 = vunpack.c.l.b16 %v44
    %v60 = vunpack.c.l.b16 %v45
    %v61 = vpack.c.b16 %v58, %v57
    %v62 = vpack.c.b16 %v60, %v59
    %vm65 = vcmask 261120
    %v67 = vsel %vm65, %v41, 0
    %69 = vmatprep.subr.bf16.mxu0 0
    %70 = vmatpush1.bf16.msra.mxu0 %v61
    %71 = vmatprep.subr.bf16.mxu0 0
    %72 = vmatpush1.bf16.msra.mxu0 %v62
    %73 = vmatprep.subr.bf16.mxu0 0
    %74 = vmatpush1.bf16.msra.mxu0 0
    %75 = vmatprep.subr.bf16.mxu0 0
    %76 = vmatpush1.bf16.msra.mxu0 0
    %77 = vmatprep.subr.bf16.mxu0 0
    %78 = vmatpush1.bf16.msra.mxu0 0
    %79 = vmatprep.subr.bf16.mxu0 0
    %80 = vmatpush1.bf16.msra.mxu0 0
    %81 = vmatprep.subr.bf16.mxu0 0
    %82 = vmatpush1.bf16.msra.mxu0 0
    %83 = vmatprep.subr.bf16.mxu0 0
    %84 = vmatpush1.bf16.msra.mxu0 0
    %85 = vmatprep.subr.bf16.mxu0 0
    %86 = vmatpush1.bf16.msra.mxu0 0
    %87 = vmatprep.subr.bf16.mxu0 0
    %88 = vmatpush1.bf16.msra.mxu0 0
    %89 = vmatprep.subr.bf16.mxu0 0
    %90 = vmatpush1.bf16.msra.mxu0 0
    %91 = vmatprep.subr.bf16.mxu0 0
    %92 = vmatpush1.bf16.msra.mxu0 0
    %93 = vmatprep.subr.bf16.mxu0 0
    %94 = vmatpush1.bf16.msra.mxu0 0
    %95 = vmatprep.subr.bf16.mxu0 0
    %96 = vmatpush1.bf16.msra.mxu0 0
    %97 = vmatprep.subr.bf16.mxu0 0
    %98 = vmatpush1.bf16.msra.mxu0 0
    %99 = vmatprep.subr.bf16.mxu0 0
    %100 = vmatpush1.bf16.msra.mxu0 0
    %101 = vmatprep.mubr.bf16.mxu0 0
    %102 = vmatmul.mubr.bf16.gmra.mrb[0].mxu0 %v67
    %v103 = vpop.f32.mrb[0].mxu0
    %v104 = vadd.f32 %v51, %v103
    %v105 = vpop.f32.mrb[0].mxu0
    %v106 = vpop.f32.mrb[0].mxu0
    %v107 = vpop.f32.mrb[0].mxu0
    %108 = vdwg.mxu0
    %v109 = vmax.f32 %v104, 0.0
    %v110 = vpack.c.bf16 %v109, %v109
    %v111 = vld [vmem:[%s3] sm:$0xf]
    %v112 = vld [vmem:[%s3 + $0x4] sm:$0xf]
    %v113 = vld [vmem:[%s3 + $0x8] sm:$0xf]
    %v114 = vld [vmem:[%s3 + $0xc] sm:$0xf]
    %v115 = vld [vmem:[%s3 + $0x10] sm:$0xf]
    %v116 = vld [vmem:[%s3 + $0x14] sm:$0xf]
    %v117 = vld [vmem:[%s3 + $0x18] sm:$0xf]
    %v118 = vld [vmem:[%s3 + $0x1c] sm:$0xf]
    %v119 = vld [vmem:[%s3 + $0x20] sm:$0xf]
    %v120 = vld [vmem:[%s3 + $0x24] sm:$0xf]
    %v121 = vld [vmem:[%s3 + $0x28] sm:$0xf]
    %v122 = vld [vmem:[%s3 + $0x2c] sm:$0xf]
    %v123 = vld [vmem:[%s3 + $0x30] sm:$0xf]
    %v124 = vld [vmem:[%s3 + $0x34] sm:$0xf]
    %v125 = vld [vmem:[%s3 + $0x38] sm:$0xf]
    %v126 = vld [vmem:[%s3 + $0x3c] sm:$0xf]
    %v127 = vld [vmem:[%s4] sm:$0x1]
    %v129 = vlaneseq
    %v130 = vshrl.u32 %v129, 7
    %v131 = vsub.s32 0, %v130
    %v132 = vrot.slane %v127, %v131
    %v150 = vunpack.c.l.b16 %v111
    %v151 = vunpack.c.l.b16 %v112
    %v152 = vunpack.c.l.b16 %v113
    %v153 = vunpack.c.l.b16 %v114
    %v154 = vunpack.c.l.b16 %v115
    %v155 = vunpack.c.l.b16 %v116
    %v156 = vunpack.c.l.b16 %v117
    %v157 = vunpack.c.l.b16 %v118
    %v158 = vunpack.c.l.b16 %v119
    %v159 = vunpack.c.l.b16 %v120
    %v160 = vunpack.c.l.b16 %v121
    %v161 = vunpack.c.l.b16 %v122
    %v162 = vunpack.c.l.b16 %v123
    %v163 = vunpack.c.l.b16 %v124
    %v164 = vunpack.c.l.b16 %v125
    %v165 = vunpack.c.l.b16 %v126
    %v166 = vpack.c.b16 %v151, %v150
    %v167 = vpack.c.b16 %v153, %v152
    %v168 = vpack.c.b16 %v155, %v154
    %v169 = vpack.c.b16 %v157, %v156
    %v170 = vpack.c.b16 %v159, %v158
    %v171 = vpack.c.b16 %v161, %v160
    %v172 = vpack.c.b16 %v163, %v162
    %v173 = vpack.c.b16 %v165, %v164
    %182 = vmatprep.subr.bf16.mxu0 0
    %183 = vmatpush1.bf16.msra.mxu0 %v166
    %184 = vmatprep.subr.bf16.mxu0 0
    %185 = vmatpush1.bf16.msra.mxu0 %v167
    %186 = vmatprep.subr.bf16.mxu0 0
    %187 = vmatpush1.bf16.msra.mxu0 %v168
    %188 = vmatprep.subr.bf16.mxu0 0
    %189 = vmatpush1.bf16.msra.mxu0 %v169
    %190 = vmatprep.subr.bf16.mxu0 0
    %191 = vmatpush1.bf16.msra.mxu0 %v170
    %192 = vmatprep.subr.bf16.mxu0 0
    %193 = vmatpush1.bf16.msra.mxu0 %v171
    %194 = vmatprep.subr.bf16.mxu0 0
    %195 = vmatpush1.bf16.msra.mxu0 %v172
    %196 = vmatprep.subr.bf16.mxu0 0
    %197 = vmatpush1.bf16.msra.mxu0 %v173
    %198 = vmatprep.subr.bf16.mxu0 0
    %199 = vmatpush1.bf16.msra.mxu0 0
    %200 = vmatprep.subr.bf16.mxu0 0
    %201 = vmatpush1.bf16.msra.mxu0 0
    %202 = vmatprep.subr.bf16.mxu0 0
    %203 = vmatpush1.bf16.msra.mxu0 0
    %204 = vmatprep.subr.bf16.mxu0 0
    %205 = vmatpush1.bf16.msra.mxu0 0
    %206 = vmatprep.subr.bf16.mxu0 0
    %207 = vmatpush1.bf16.msra.mxu0 0
    %208 = vmatprep.subr.bf16.mxu0 0
    %209 = vmatpush1.bf16.msra.mxu0 0
    %210 = vmatprep.subr.bf16.mxu0 0
    %211 = vmatpush1.bf16.msra.mxu0 0
    %212 = vmatprep.subr.bf16.mxu0 0
    %213 = vmatpush1.bf16.msra.mxu0 0
    %214 = vmatprep.mubr.bf16.mxu0 0
    %215 = vmatmul.mubr.bf16.gmra.mrb[0].mxu0 %v110
    %v216 = vpop.f32.mrb[0].mxu0
    %v217 = vadd.f32 %v132, %v216
    %v218 = vpop.f32.mrb[0].mxu0
    %v219 = vpop.f32.mrb[0].mxu0
    %v220 = vpop.f32.mrb[0].mxu0
    %221 = vdwg.mxu0
    %v222 = vmax.f32 %v217, 0.0
    %v223 = vpack.c.bf16 %v222, %v222
    %v224 = vld [vmem:[%s5] sm:$0xf]
    %v225 = vld [vmem:[%s5 + $0x4] sm:$0xf]
    %v226 = vld [vmem:[%s5 + $0x8] sm:$0xf]
    %v227 = vld [vmem:[%s5 + $0xc] sm:$0xf]
    %v228 = vld [vmem:[%s5 + $0x10] sm:$0xf]
    %v229 = vld [vmem:[%s5 + $0x14] sm:$0xf]
    %v230 = vld [vmem:[%s5 + $0x18] sm:$0xf]
    %v231 = vld [vmem:[%s5 + $0x1c] sm:$0xf]
    %v232 = vld [vmem:[%s6] sm:$0x1]
    %v234 = vlaneseq
    %v235 = vshrl.u32 %v234, 7
    %v236 = vsub.s32 0, %v235
    %v237 = vrot.slane %v232, %v236
    %v247 = vunpack.c.l.b16 %v224
    %v248 = vunpack.c.l.b16 %v225
    %v249 = vunpack.c.l.b16 %v226
    %v250 = vunpack.c.l.b16 %v227
    %v251 = vunpack.c.l.b16 %v228
    %v252 = vunpack.c.l.b16 %v229
    %v253 = vunpack.c.l.b16 %v230
    %v254 = vunpack.c.l.b16 %v231
    %v255 = vpack.c.b16 %v248, %v247
    %v256 = vpack.c.b16 %v250, %v249
    %v257 = vpack.c.b16 %v252, %v251
    %v258 = vpack.c.b16 %v254, %v253
    %vm263 = vcmask 523264
    %v265 = vsel %vm263, %v223, 0
    %267 = vmatprep.subr.bf16.mxu0 0
    %268 = vmatpush1.bf16.msra.mxu0 %v255
    %269 = vmatprep.subr.bf16.mxu0 0
    %270 = vmatpush1.bf16.msra.mxu0 %v256
    %271 = vmatprep.subr.bf16.mxu0 0
    %272 = vmatpush1.bf16.msra.mxu0 %v257
    %273 = vmatprep.subr.bf16.mxu0 0
    %274 = vmatpush1.bf16.msra.mxu0 %v258
    %275 = vmatprep.subr.bf16.mxu0 0
    %276 = vmatpush1.bf16.msra.mxu0 0
    %277 = vmatprep.subr.bf16.mxu0 0
    %278 = vmatpush1.bf16.msra.mxu0 0
    %279 = vmatprep.subr.bf16.mxu0 0
    %280 = vmatpush1.bf16.msra.mxu0 0
    %281 = vmatprep.subr.bf16.mxu0 0
    %282 = vmatpush1.bf16.msra.mxu0 0
    %283 = vmatprep.subr.bf16.mxu0 0
    %284 = vmatpush1.bf16.msra.mxu0 0
    %285 = vmatprep.subr.bf16.mxu0 0
    %286 = vmatpush1.bf16.msra.mxu0 0
    %287 = vmatprep.subr.bf16.mxu0 0
    %288 = vmatpush1.bf16.msra.mxu0 0
    %289 = vmatprep.subr.bf16.mxu0 0
    %290 = vmatpush1.bf16.msra.mxu0 0
    %291 = vmatprep.subr.bf16.mxu0 0
    %292 = vmatpush1.bf16.msra.mxu0 0
    %293 = vmatprep.subr.bf16.mxu0 0
    %294 = vmatpush1.bf16.msra.mxu0 0
    %295 = vmatprep.subr.bf16.mxu0 0
    %296 = vmatpush1.bf16.msra.mxu0 0
    %297 = vmatprep.subr.bf16.mxu0 0
    %298 = vmatpush1.bf16.msra.mxu0 0
    %299 = vmatprep.mubr.bf16.mxu0 0
    %300 = vmatmul.mubr.bf16.gmra.mrb[0].mxu0 %v265
    %v301 = vpop.f32.mrb[0].mxu0
    %v302 = vadd.f32 %v237, %v301
    %v303 = vpop.f32.mrb[0].mxu0
    %v304 = vpop.f32.mrb[0].mxu0
    %v305 = vpop.f32.mrb[0].mxu0
    %306 = vdwg.mxu0
    %v307 = vmax.f32 %v302, 0.0
    %v308 = vpack.c.bf16 %v307, %v307
    %v309 = vld [vmem:[%s7] sm:$0xf]
    %v310 = vld [vmem:[%s7 + $0x4] sm:$0xf]
    %v311 = vld [vmem:[%s7 + $0x8] sm:$0xf]
    %v312 = vld [vmem:[%s7 + $0xc] sm:$0xf]
    %v313 = vld [vmem:[%s7 + $0x10] sm:$0xf]
    %v314 = vld [vmem:[%s7 + $0x14] sm:$0xf]
    %v315 = vld [vmem:[%s7 + $0x18] sm:$0xf]
    %v316 = vld [vmem:[%s7 + $0x1c] sm:$0xf]
    %v317 = vld [vmem:[%s8] sm:$0x1]
    %v319 = vlaneseq
    %v320 = vshrl.u32 %v319, 7
    %v321 = vsub.s32 0, %v320
    %v322 = vrot.slane %v317, %v321
    %v332 = vunpack.c.l.b16 %v309
    %v333 = vunpack.c.l.b16 %v310
    %v334 = vunpack.c.l.b16 %v311
    %v335 = vunpack.c.l.b16 %v312
    %v336 = vunpack.c.l.b16 %v313
    %v337 = vunpack.c.l.b16 %v314
    %v338 = vunpack.c.l.b16 %v315
    %v339 = vunpack.c.l.b16 %v316
    %v340 = vpack.c.b16 %v333, %v332
    %v341 = vpack.c.b16 %v335, %v334
    %v342 = vpack.c.b16 %v337, %v336
    %v343 = vpack.c.b16 %v339, %v338
    %v349 = vsel %vm263, %v308, 0
    %351 = vmatprep.subr.bf16.mxu0 0
    %352 = vmatpush1.bf16.msra.mxu0 %v340
    %353 = vmatprep.subr.bf16.mxu0 0
    %354 = vmatpush1.bf16.msra.mxu0 %v341
    %355 = vmatprep.subr.bf16.mxu0 0
    %356 = vmatpush1.bf16.msra.mxu0 %v342
    %357 = vmatprep.subr.bf16.mxu0 0
    %358 = vmatpush1.bf16.msra.mxu0 %v343
    %359 = vmatprep.subr.bf16.mxu0 0
    %360 = vmatpush1.bf16.msra.mxu0 0
    %361 = vmatprep.subr.bf16.mxu0 0
    %362 = vmatpush1.bf16.msra.mxu0 0
    %363 = vmatprep.subr.bf16.mxu0 0
    %364 = vmatpush1.bf16.msra.mxu0 0
    %365 = vmatprep.subr.bf16.mxu0 0
    %366 = vmatpush1.bf16.msra.mxu0 0
    %367 = vmatprep.subr.bf16.mxu0 0
    %368 = vmatpush1.bf16.msra.mxu0 0
    %369 = vmatprep.subr.bf16.mxu0 0
    %370 = vmatpush1.bf16.msra.mxu0 0
    %371 = vmatprep.subr.bf16.mxu0 0
    %372 = vmatpush1.bf16.msra.mxu0 0
    %373 = vmatprep.subr.bf16.mxu0 0
    %374 = vmatpush1.bf16.msra.mxu0 0
    %375 = vmatprep.subr.bf16.mxu0 0
    %376 = vmatpush1.bf16.msra.mxu0 0
    %377 = vmatprep.subr.bf16.mxu0 0
    %378 = vmatpush1.bf16.msra.mxu0 0
    %379 = vmatprep.subr.bf16.mxu0 0
    %380 = vmatpush1.bf16.msra.mxu0 0
    %381 = vmatprep.subr.bf16.mxu0 0
    %382 = vmatpush1.bf16.msra.mxu0 0
    %383 = vmatprep.mubr.bf16.mxu0 0
    %384 = vmatmul.mubr.bf16.gmra.mrb[0].mxu0 %v349
    %v385 = vpop.f32.mrb[0].mxu0
    %v386 = vadd.f32 %v322, %v385
    %v387 = vpop.f32.mrb[0].mxu0
    %v388 = vpop.f32.mrb[0].mxu0
    %v389 = vpop.f32.mrb[0].mxu0
    %390 = vdwg.mxu0
    %v391 = vmax.f32 %v386, 0.0
    %v392 = vpack.c.bf16 %v391, %v391
    %v393 = vld [vmem:[%s9] sm:$0xf]
    %v394 = vld [vmem:[%s9 + $0x4] sm:$0xf]
    %v395 = vld [vmem:[%s9 + $0x8] sm:$0xf]
    %v396 = vld [vmem:[%s9 + $0xc] sm:$0xf]
    %v397 = vld [vmem:[%s9 + $0x10] sm:$0xf]
    %v398 = vld [vmem:[%s9 + $0x14] sm:$0xf]
    %v399 = vld [vmem:[%s9 + $0x18] sm:$0xf]
    %v400 = vld [vmem:[%s9 + $0x1c] sm:$0xf]
    %v401 = vld [vmem:[%s9 + $0x20] sm:$0xf]
    %v402 = vld [vmem:[%s9 + $0x24] sm:$0xf]
    %v403 = vld [vmem:[%s9 + $0x28] sm:$0xf]
    %v404 = vld [vmem:[%s9 + $0x2c] sm:$0xf]
    %v405 = vld [vmem:[%s9 + $0x30] sm:$0xf]
    %v406 = vld [vmem:[%s9 + $0x34] sm:$0xf]
    %v407 = vld [vmem:[%s9 + $0x38] sm:$0xf]
    %v408 = vld [vmem:[%s9 + $0x3c] sm:$0xf]
    %v409 = vld [vmem:[%s10] sm:$0x1]
    %v411 = vlaneseq
    %v412 = vshrl.u32 %v411, 7
    %v413 = vsub.s32 0, %v412
    %v414 = vrot.slane %v409, %v413
    %v432 = vunpack.c.l.b16 %v393
    %v433 = vunpack.c.l.b16 %v394
    %v434 = vunpack.c.l.b16 %v395
    %v435 = vunpack.c.l.b16 %v396
    %v436 = vunpack.c.l.b16 %v397
    %v437 = vunpack.c.l.b16 %v398
    %v438 = vunpack.c.l.b16 %v399
    %v439 = vunpack.c.l.b16 %v400
    %v440 = vunpack.c.l.b16 %v401
    %v441 = vunpack.c.l.b16 %v402
    %v442 = vunpack.c.l.b16 %v403
    %v443 = vunpack.c.l.b16 %v404
    %v444 = vunpack.c.l.b16 %v405
    %v445 = vunpack.c.l.b16 %v406
    %v446 = vunpack.c.l.b16 %v407
    %v447 = vunpack.c.l.b16 %v408
    %v448 = vpack.c.b16 %v433, %v432
    %v449 = vpack.c.b16 %v435, %v434
    %v450 = vpack.c.b16 %v437, %v436
    %v451 = vpack.c.b16 %v439, %v438
    %v452 = vpack.c.b16 %v441, %v440
    %v453 = vpack.c.b16 %v443, %v442
    %v454 = vpack.c.b16 %v445, %v444
    %v455 = vpack.c.b16 %v447, %v446
    %464 = vmatprep.subr.bf16.mxu0 0
    %465 = vmatpush1.bf16.msra.mxu0 %v448
    %466 = vmatprep.subr.bf16.mxu0 0
    %467 = vmatpush1.bf16.msra.mxu0 %v449
    %468 = vmatprep.subr.bf16.mxu0 0
    %469 = vmatpush1.bf16.msra.mxu0 %v450
    %470 = vmatprep.subr.bf16.mxu0 0
    %471 = vmatpush1.bf16.msra.mxu0 %v451
    %472 = vmatprep.subr.bf16.mxu0 0
    %473 = vmatpush1.bf16.msra.mxu0 %v452
    %474 = vmatprep.subr.bf16.mxu0 0
    %475 = vmatpush1.bf16.msra.mxu0 %v453
    %476 = vmatprep.subr.bf16.mxu0 0
    %477 = vmatpush1.bf16.msra.mxu0 %v454
    %478 = vmatprep.subr.bf16.mxu0 0
    %479 = vmatpush1.bf16.msra.mxu0 %v455
    %480 = vmatprep.subr.bf16.mxu0 0
    %481 = vmatpush1.bf16.msra.mxu0 0
    %482 = vmatprep.subr.bf16.mxu0 0
    %483 = vmatpush1.bf16.msra.mxu0 0
    %484 = vmatprep.subr.bf16.mxu0 0
    %485 = vmatpush1.bf16.msra.mxu0 0
    %486 = vmatprep.subr.bf16.mxu0 0
    %487 = vmatpush1.bf16.msra.mxu0 0
    %488 = vmatprep.subr.bf16.mxu0 0
    %489 = vmatpush1.bf16.msra.mxu0 0
    %490 = vmatprep.subr.bf16.mxu0 0
    %491 = vmatpush1.bf16.msra.mxu0 0
    %492 = vmatprep.subr.bf16.mxu0 0
    %493 = vmatpush1.bf16.msra.mxu0 0
    %494 = vmatprep.subr.bf16.mxu0 0
    %495 = vmatpush1.bf16.msra.mxu0 0
    %496 = vmatprep.mubr.bf16.mxu0 0
    %497 = vmatmul.mubr.bf16.gmra.mrb[0].mxu0 %v392
    %v498 = vpop.f32.mrb[0].mxu0
    %v499 = vadd.f32 %v414, %v498
    %v500 = vpop.f32.mrb[0].mxu0
    %v501 = vpop.f32.mrb[0].mxu0
    %v502 = vpop.f32.mrb[0].mxu0
    %503 = vdwg.mxu0
    %504 = vst.msk [vmem:[#allocation2] sm:$0xff] %vm65, %v499
    // Predicated region
    $region46: #{tpu_custom_call.1} parent=1 // pred_check
      _
    $region47: #{tpu_custom_call.1} parent=1 // pred_check_branch
      %506 = sbr.rel (0) target = $region49
    $region48: #{tpu_custom_call.1} parent=1 // pred_region
      %s508 = ssub.s32 128, 128
      %509 = vsyncadd [#allocation3], %s508
      %s511 = sshll.u32 [#allocation2], 4
      %s512 = int_to_ptr.vmem [resolvable:$true] %s511
      %514 = dma.vmem_to_hbm [thread:$0]  %s512, 128, %s11, [#allocation3]
    $region49: #{tpu_custom_call.1} parent=1 // pred_fallthru
      _
    // Predicated region
    $region50: #{tpu_custom_call.1} parent=1 // pred_check
      _
    $region51: #{tpu_custom_call.1} parent=1 // pred_check_branch
      %516 = sbr.rel (0) target = $region53
    $region52: #{tpu_custom_call.1} parent=1 // pred_region
      %517 = dma.done [#allocation3], 128
    $region53: #{tpu_custom_call.1} parent=1 // pred_fallthru
      _
    %518 = vsyncpa [#allocation3], 1

</llo_original>
